<compile_context>
chip_gen: v5e
topology: v5e:2x2
jax: 0.10.0
libtpu: 0.0.40
codegen_flags: <defaults>
</compile_context>

<pallas_src>
import functools

import jax
import jax.numpy as jnp
from jax.experimental import pallas as pl
from jax.experimental.pallas import tpu as pltpu


# ---------------------------------------------------------------------------
# Small helpers (all static / trace-time Python).
# ---------------------------------------------------------------------------
def _round_up(x, m):
    return ((x + m - 1) // m) * m


def _sublane_multiple(itemsize):
    # f32 -> 8 sublanes per tile, bf16 -> 16, int8 -> 32 (sub-32-bit packs
    # along sublanes).
    return max(8, 32 // itemsize)


def _vmem_budget():
    """Return (per-buffer budget bytes, vmem_limit cap bytes), gated on the
    physical VMEM size so 128 MiB parts (v5e/v6e) get bigger tiles while the
    64 MiB v7x part keeps conservative caps."""
    budget, cap = 6 << 20, 32 << 20            # conservative default (v7x)
    try:
        info = pltpu.get_tpu_info()
        if info.vmem_capacity_bytes >= (100 << 20):   # v5e / v6e: 128 MiB VMEM
            budget, cap = 12 << 20, 64 << 20
    except Exception:  # pragma: no cover - hardware query is best-effort
        pass
    return budget, cap


def _pick_channel_fold(C, HW, sub):
    """Fold k consecutive channels into the lane axis (a free contiguous NCHW
    reshape) when HW is not lane-dense.  Pick the smallest k that strictly
    minimizes the padded VMEM footprint (lane pad to 128, sublane pad to
    `sub`); k == 1 means no folding."""
    if HW % 128 == 0:
        return 1
    best_k = 1
    best_elems = _round_up(C, sub) * _round_up(HW, 128)
    for k in range(2, min(C, 8) + 1):
        if C % k:
            continue
        elems = _round_up(C // k, sub) * _round_up(k * HW, 128)
        if elems < best_elems:
            best_k, best_elems = k, elems
    return best_k


def _pick_batch_tile(batch, per_image_bytes, budget_bytes):
    """Largest divisor of `batch` whose (padded) block fits the per-buffer
    budget while keeping >= 2 grid steps per TensorCore on v7x (>= 4 steps
    total when the batch allows), so prologue/epilogue DMA stays hidden."""
    min_steps = min(4, batch)
    bt = 1
    for cand in range(1, batch + 1):
        if batch % cand:
            continue
        if cand * per_image_bytes > budget_bytes:
            continue
        if (batch // cand) < min_steps:
            continue
        bt = cand
    return bt


# ---------------------------------------------------------------------------
# Fused single-pass kernel: pool + gate + scale on a (bt, G, k*HW) block.
# ---------------------------------------------------------------------------
def se_fused_kernel(x_ref, w1s_ref, b1_ref, w2s_ref, b2s_ref, o_ref):
    # x_ref / o_ref : (bt, G, k*HW), native dtype.  Channel c = g*k + j lives
    # in lane segment [j*HW, (j+1)*HW) of row g (free NCHW reshape).
    # w1s_ref: (k, G, Cr)  b1_ref: (1, Cr)  w2s_ref: (k, Cr, G)  b2s_ref: (k, 1, G)
    k = w1s_ref.shape[0]
    HW = x_ref.shape[-1] // k
    inv_hw = 1.0 / HW

    # --- Squeeze: per-channel mean.  The reduce accumulates in f32 via the
    # dtype= argument (no full-block f32 shadow of a bf16 tile); x is read
    # per-segment straight from the ref.
    # TODO(synk): if a bundle dump ever shows the VALU slot co-critical on the
    # bf16 path (v5e), replace this VPU reduce with an MXU dot against ones.
    s = b1_ref[...]                                            # (1, Cr) f32
    for j in range(k):                                         # static unroll
        seg = x_ref[:, :, j * HW:(j + 1) * HW]                 # (bt, G, HW)
        pooled_j = jnp.sum(seg, axis=-1, dtype=jnp.float32) * inv_hw  # (bt, G)
        s = s + jnp.dot(pooled_j, w1s_ref[j],
                        preferred_element_type=jnp.float32)    # (bt, Cr)
    s = jnp.maximum(s, 0.0)                                    # ReLU

    # --- Excite + scale: hardsigmoid gate per channel segment, applied with a
    # second read of x_ref so the big block's live range does not span the
    # matmuls; gate is cast to the native dtype before the broadcast multiply.
    for j in range(k):
        gj = jnp.dot(s, w2s_ref[j],
                     preferred_element_type=jnp.float32) + b2s_ref[j]  # (bt, G)
        gj = jnp.clip(gj + 3.0, 0.0, 6.0) * (1.0 / 6.0)                # hardsigmoid
        o_ref[:, :, j * HW:(j + 1) * HW] = (
            x_ref[:, :, j * HW:(j + 1) * HW]
            * gj.astype(o_ref.dtype)[:, :, None])


# ---------------------------------------------------------------------------
# Two-pass fallback for oversized per-image blocks (HW-tiled pool + scale).
# ---------------------------------------------------------------------------
def _pool_gate_kernel(x_ref, w1t_ref, b1_ref, w2t_ref, b2_ref, g_ref, acc_ref,
                      *, hw):
    # x_ref: (1, C, T) tile of one image; acc_ref: (1, C) f32 running sum;
    # g_ref: (1, 1, C) f32 gate output (written once at the last HW tile).
    t = pl.program_id(1)
    nt = pl.num_programs(1)
    T = x_ref.shape[-1]

    @pl.when(t == 0)
    def _():
        acc_ref[...] = jnp.zeros_like(acc_ref)

    xt = x_ref[...]
    if hw % T != 0:
        # Mask the stale lanes of the final (partial) tile before reducing.
        lane = jax.lax.broadcasted_iota(jnp.int32, xt.shape, 2)
        valid = (t * T + lane) < hw
        xt = jnp.where(valid, xt, jnp.zeros_like(xt))
    acc_ref[...] += jnp.sum(xt, axis=-1, dtype=jnp.float32)     # (1, C)

    @pl.when(t == nt - 1)
    def _():
        pooled = acc_ref[...] * (1.0 / hw)                      # (1, C)
        s = jnp.dot(pooled, w1t_ref[...],
                    preferred_element_type=jnp.float32) + b1_ref[...]
        s = jnp.maximum(s, 0.0)
        g = jnp.dot(s, w2t_ref[...],
                    preferred_element_type=jnp.float32) + b2_ref[...]
        g_ref[0] = jnp.clip(g + 3.0, 0.0, 6.0) * (1.0 / 6.0)    # (1, C)


def _scale_kernel(x_ref, g_ref, o_ref):
    # x_ref / o_ref: (1, C, T); g_ref: (1, 1, C) f32.
    g = g_ref[0].astype(o_ref.dtype)                            # (1, C)
    o_ref[...] = x_ref[...] * g[:, :, None]


def _se_two_pass(x_nchw, w1t, b1r, w2t, b2r, budget, vmem_cap):
    """Fallback when even a single (padded) image exceeds the per-buffer
    budget: pass 1 pools over HW tiles and emits the (B, C) gate, pass 2
    re-reads x and applies it.  ~1.5x the fused path's HBM traffic, but every
    block is guaranteed to fit VMEM."""
    B, C, H, W = x_nchw.shape
    Cr = w1t.shape[1]
    HW = H * W
    itemsize = jnp.dtype(x_nchw.dtype).itemsize
    sub = _sublane_multiple(itemsize)

    x2 = x_nchw.reshape(B, C, HW)

    bytes_per_lane = _round_up(C, sub) * itemsize
    max_lanes = max(128, (budget // (bytes_per_lane * 128)) * 128)
    # TODO(synk): if even a (C, 128) slab exceeds the budget (enormous C with
    # tiny HW), the channel axis would need tiling too; not implemented.
    T = int(min(_round_up(HW, 128), max_lanes))
    nt = int(pl.cdiv(HW, T))
    block_bytes = _round_up(C, sub) * T * itemsize
    vmem_limit = int(min(max(4 * block_bytes + (2 << 20), 16 << 20), vmem_cap))

    gate = pl.pallas_call(
        functools.partial(_pool_gate_kernel, hw=HW),
        out_shape=jax.ShapeDtypeStruct((B, 1, C), jnp.float32),
        grid_spec=pltpu.PrefetchScalarGridSpec(
            num_scalar_prefetch=0,
            grid=(B, nt),
            in_specs=[
                pl.BlockSpec((1, C, T), lambda b, t: (b, 0, t)),
                pl.BlockSpec((C, Cr), lambda b, t: (0, 0)),
                pl.BlockSpec((1, Cr), lambda b, t: (0, 0)),
                pl.BlockSpec((Cr, C), lambda b, t: (0, 0)),
                pl.BlockSpec((1, C), lambda b, t: (0, 0)),
            ],
            out_specs=pl.BlockSpec((1, 1, C), lambda b, t: (b, 0, 0)),
            scratch_shapes=[pltpu.VMEM((1, C), jnp.float32)],
        ),
        compiler_params=pltpu.CompilerParams(
            dimension_semantics=("parallel", "arbitrary"),
            vmem_limit_bytes=vmem_limit,
        ),
        cost_estimate=pl.CostEstimate(
            flops=int(B * C * HW + 4 * B * C * Cr),
            transcendentals=0,
            bytes_accessed=int(B * C * HW * itemsize + 4 * B * C),
        ),
    )(x2, w1t, b1r, w2t, b2r)

    out = pl.pallas_call(
        _scale_kernel,
        out_shape=jax.ShapeDtypeStruct((B, C, HW), x_nchw.dtype),
        grid_spec=pltpu.PrefetchScalarGridSpec(
            num_scalar_prefetch=0,
            grid=(B, nt),
            in_specs=[
                pl.BlockSpec((1, C, T), lambda b, t: (b, 0, t)),
                pl.BlockSpec((1, 1, C), lambda b, t: (b, 0, 0)),
            ],
            out_specs=pl.BlockSpec((1, C, T), lambda b, t: (b, 0, t)),
        ),
        compiler_params=pltpu.CompilerParams(
            dimension_semantics=("parallel", "parallel"),
            vmem_limit_bytes=vmem_limit,
        ),
        cost_estimate=pl.CostEstimate(
            flops=int(B * C * HW),
            transcendentals=0,
            bytes_accessed=int(2 * B * C * HW * itemsize + 4 * B * C),
        ),
    )(x2, gate)

    return out.reshape(B, C, H, W)


# ---------------------------------------------------------------------------
# Public wrapper.
# ---------------------------------------------------------------------------
def se_module(x_nchw, w1, b1, w2, b2, *, buffer_budget_bytes=None):
    """x_nchw: (B, C, H, W); w1: (Cr, C, 1, 1); b1: (Cr,); w2: (C, Cr, 1, 1); b2: (C,)."""
    B, C, H, W = x_nchw.shape
    Cr = w1.shape[0]
    HW = H * W
    itemsize = jnp.dtype(x_nchw.dtype).itemsize
    sub = _sublane_multiple(itemsize)

    budget, vmem_cap = _vmem_budget()
    if buffer_budget_bytes is not None:            # test hook / manual override
        budget = int(buffer_budget_bytes)

    # 1x1 conv weights as plain matmul operands; gate math stays in f32.
    w1t = w1.reshape(Cr, C).T.astype(jnp.float32)      # (C, Cr)
    w2t = w2.reshape(C, Cr).T.astype(jnp.float32)      # (Cr, C)
    b1r = b1.reshape(1, Cr).astype(jnp.float32)
    b2r = b2.reshape(1, C).astype(jnp.float32)

    # Lane densification: fold k consecutive channels into the lane axis when
    # that strictly shrinks the padded VMEM footprint (small HW).
    k = _pick_channel_fold(C, HW, sub)
    G, L = C // k, k * HW

    # Padded per-image block footprint (lane pad to 128, sublane pad to `sub`).
    per_image_padded = _round_up(G, sub) * _round_up(L, 128) * itemsize

    if per_image_padded > budget:
        # Even a single image does not fit the per-buffer budget: two-pass path.
        return _se_two_pass(x_nchw, w1t, b1r, w2t, b2r, budget, vmem_cap)

    # Free, contiguous NCHW reshape -- no layout transpose, no extra HBM pass.
    x2 = x_nchw.reshape(B, G, L)

    # Per-segment weight slabs: channel c = g*k + j -> rows/cols j::k.
    w1s = jnp.stack([w1t[j::k] for j in range(k)], axis=0)        # (k, G, Cr)
    w2s = jnp.stack([w2t[:, j::k] for j in range(k)], axis=0)     # (k, Cr, G)
    b2s = jnp.stack([b2r[:, j::k] for j in range(k)], axis=0)     # (k, 1, G)

    bt = _pick_batch_tile(B, per_image_padded, budget)
    block_bytes = bt * per_image_padded
    # in + out, double-buffered, plus headroom for the tiny weight operands.
    vmem_limit = int(min(max(4 * block_bytes + (2 << 20), 16 << 20), vmem_cap))

    cost = pl.CostEstimate(
        flops=int(2 * B * C * HW + 4 * B * C * Cr),
        transcendentals=0,
        bytes_accessed=int(2 * B * C * HW * itemsize
                           + 4 * (w1s.size + w2s.size + b1r.size + b2s.size)),
    )

    out = pl.pallas_call(
        se_fused_kernel,
        out_shape=jax.ShapeDtypeStruct((B, G, L), x_nchw.dtype),
        grid_spec=pltpu.PrefetchScalarGridSpec(
            num_scalar_prefetch=0,
            grid=(B // bt,),
            in_specs=[
                pl.BlockSpec((bt, G, L), lambda i: (i, 0, 0)),
                pl.BlockSpec((k, G, Cr), lambda i: (0, 0, 0)),
                pl.BlockSpec((1, Cr), lambda i: (0, 0)),
                pl.BlockSpec((k, Cr, G), lambda i: (0, 0, 0)),
                pl.BlockSpec((k, 1, G), lambda i: (0, 0, 0)),
            ],
            out_specs=pl.BlockSpec((bt, G, L), lambda i: (i, 0, 0)),
        ),
        compiler_params=pltpu.CompilerParams(
            dimension_semantics=("parallel",),
            vmem_limit_bytes=vmem_limit,
        ),
        cost_estimate=cost,
    )(x2, w1s, b1r, w2s, b2s)

    return out.reshape(B, C, H, W)


# ---------------------------------------------------------------------------
# Pure-JAX reference matching the PyTorch forward (NCHW, f32 math).
# ---------------------------------------------------------------------------
def se_module_ref(x, w1, b1, w2, b2):
    B, C, H, W = x.shape
    Cr = w1.shape[0]
    xf = x.astype(jnp.float32)
    pooled = jnp.mean(xf, axis=(2, 3))                 # (B, C)
    s = pooled @ w1.reshape(Cr, C).T.astype(jnp.float32) + b1.astype(jnp.float32)
    s = jnp.maximum(s, 0.0)
    g = s @ w2.reshape(C, Cr).T.astype(jnp.float32) + b2.astype(jnp.float32)
    g = jnp.clip(g + 3.0, 0.0, 6.0) / 6.0
    return xf * g[:, :, None, None]


def _make_inputs(key, B, C, H, W, reduction):
    Cr = max(C // reduction, 1)
    kx, k1, kb1, k2, kb2 = jax.random.split(key, 5)
    x = jax.random.normal(kx, (B, C, H, W), dtype=jnp.float32)
    w1 = jax.random.normal(k1, (Cr, C, 1, 1), dtype=jnp.float32) * 0.5
    b1 = jax.random.normal(kb1, (Cr,), dtype=jnp.float32) * 0.1
    w2 = jax.random.normal(k2, (C, Cr, 1, 1), dtype=jnp.float32) * 0.5
    b2 = jax.random.normal(kb2, (C,), dtype=jnp.float32) * 0.1
    return x, w1, b1, w2, b2


if __name__ == "__main__":
    key = jax.random.PRNGKey(0)
    k0, k1, k2 = jax.random.split(key, 3)

    # 1) Primary shape (lane-dense HW): f32 path, exact-ish check.
    x, w1, b1, w2, b2 = _make_inputs(k0, B=2, C=4, H=16, W=16, reduction=4)
    out = jax.block_until_ready(se_module(x, w1, b1, w2, b2))
    ref = jax.block_until_ready(se_module_ref(x, w1, b1, w2, b2))
    assert out.shape == x.shape and out.dtype == x.dtype
    assert jnp.allclose(out, ref, atol=1e-5, rtol=1e-5), "f32 mismatch vs reference"

    # 2) bf16 path: narrow dtype through DMA + final multiply, f32 gate math.
    x_bf16 = x.astype(jnp.bfloat16)
    out_bf16 = jax.block_until_ready(se_module(x_bf16, w1, b1, w2, b2))
    ref_bf16 = jax.block_until_ready(
        se_module_ref(x_bf16.astype(jnp.float32), w1, b1, w2, b2))
    assert out_bf16.dtype == jnp.bfloat16
    assert jnp.allclose(out_bf16.astype(jnp.float32), ref_bf16,
                        atol=5e-2, rtol=5e-2), "bf16 mismatch vs reference"

    # 3) Small spatial map (7x7): exercises the channel-folded lane-dense path.
    xs, w1s_, b1s_, w2s_, b2s_ = _make_inputs(k1, B=2, C=16, H=7, W=7, reduction=4)
    out_s = jax.block_until_ready(se_module(xs, w1s_, b1s_, w2s_, b2s_))
    ref_s = jax.block_until_ready(se_module_ref(xs, w1s_, b1s_, w2s_, b2s_))
    assert jnp.allclose(out_s, ref_s, atol=1e-5, rtol=1e-5), "folded-path mismatch"

    # 4) Oversized-block fallback (forced via a tiny budget): two-pass path
    #    with HW tiling and a masked partial tile.
    xl, w1l, b1l, w2l, b2l = _make_inputs(k2, B=2, C=8, H=31, W=31, reduction=4)
    out_l = jax.block_until_ready(
        se_module(xl, w1l, b1l, w2l, b2l, buffer_budget_bytes=16 * 1024))
    ref_l = jax.block_until_ready(se_module_ref(xl, w1l, b1l, w2l, b2l))
    assert jnp.allclose(out_l, ref_l, atol=1e-4, rtol=1e-4), "two-pass mismatch"

    print("KERNEL_OK")
</pallas_src>

<mosaic_0001>
module attributes {stable_mosaic.version = 11 : i64} {
  func.func @se_fused_kernel(%arg0: i32, %arg1: memref<1x4x256xf32, #tpu.memory_space<vmem>>, %arg2: memref<1x4x1xf32, #tpu.memory_space<vmem>>, %arg3: memref<1x1xf32, #tpu.memory_space<vmem>>, %arg4: memref<1x1x4xf32, #tpu.memory_space<vmem>>, %arg5: memref<1x1x4xf32, #tpu.memory_space<vmem>>, %arg6: memref<1x4x256xf32, #tpu.memory_space<vmem>>) attributes {dimension_semantics = [#tpu.dimension_semantics<parallel>], iteration_bounds = array<i64: 2>, scalar_prefetch = 0 : i64, scratch_operands = 0 : i64, tpu.core_type = #tpu.core_type<tc>, window_params = [{transform_indices = @transform_0, window_bounds = array<i64: 1, 4, 256>}, {pipeline_mode = #tpu.pipeline_mode<synchronous>, transform_indices = @transform_1, window_bounds = array<i64: 1, 4, 1>}, {pipeline_mode = #tpu.pipeline_mode<synchronous>, transform_indices = @transform_2, window_bounds = array<i64: 1, 1>}, {pipeline_mode = #tpu.pipeline_mode<synchronous>, transform_indices = @transform_3, window_bounds = array<i64: 1, 1, 4>}, {pipeline_mode = #tpu.pipeline_mode<synchronous>, transform_indices = @transform_4, window_bounds = array<i64: 1, 1, 4>}, {transform_indices = @transform_5, window_bounds = array<i64: 1, 4, 256>}]} {
    %c0 = arith.constant 0 : index
    %c0_0 = arith.constant 0 : index
    %0 = vector.load %arg3[%c0, %c0_0] : memref<1x1xf32, #tpu.memory_space<vmem>>, vector<1x1xf32>
    %c0_1 = arith.constant 0 : index
    %c0_2 = arith.constant 0 : index
    %c0_3 = arith.constant 0 : index
    %1 = vector.load %arg1[%c0_1, %c0_2, %c0_3] : memref<1x4x256xf32, #tpu.memory_space<vmem>>, vector<1x4x256xf32>
    %cst = arith.constant dense<0.000000e+00> : vector<1x4xf32>
    %2 = vector.multi_reduction <add>, %1, %cst [2] : vector<1x4x256xf32> to vector<1x4xf32>
    %cst_4 = arith.constant 3.906250e-03 : f32
    %3 = vector.broadcast %cst_4 : f32 to vector<1x4xf32>
    %4 = arith.mulf %2, %3 : vector<1x4xf32>
    %c0_5 = arith.constant 0 : index
    %c0_6 = arith.constant 0 : index
    %c0_7 = arith.constant 0 : index
    %5 = vector.load %arg2[%c0_5, %c0_6, %c0_7] : memref<1x4x1xf32, #tpu.memory_space<vmem>>, vector<1x4x1xf32>
    %6 = vector.shape_cast %5 : vector<1x4x1xf32> to vector<4x1xf32>
    %cst_8 = arith.constant dense<0.000000e+00> : vector<1x1xf32>
    %7 = tpu.matmul %4, %6, %cst_8 {dimension_numbers = #tpu.dot_dimension_numbers<[1], [0], [0], [1], [0, 0, 1, 1], [], []>} : vector<1x4xf32>, vector<4x1xf32>, vector<1x1xf32> -> vector<1x1xf32>
    %8 = arith.addf %0, %7 : vector<1x1xf32>
    %cst_9 = arith.constant 0.000000e+00 : f32
    %9 = vector.broadcast %cst_9 : f32 to vector<1x1xf32>
    %10 = arith.maximumf %8, %9 : vector<1x1xf32>
    %c0_10 = arith.constant 0 : index
    %c0_11 = arith.constant 0 : index
    %c0_12 = arith.constant 0 : index
    %11 = vector.load %arg4[%c0_10, %c0_11, %c0_12] : memref<1x1x4xf32, #tpu.memory_space<vmem>>, vector<1x1x4xf32>
    %12 = vector.shape_cast %11 : vector<1x1x4xf32> to vector<1x4xf32>
    %cst_13 = arith.constant dense<0.000000e+00> : vector<1x4xf32>
    %13 = tpu.matmul %10, %12, %cst_13 {dimension_numbers = #tpu.dot_dimension_numbers<[1], [0], [0], [1], [0, 0, 1, 1], [], []>} : vector<1x1xf32>, vector<1x4xf32>, vector<1x4xf32> -> vector<1x4xf32>
    %c0_14 = arith.constant 0 : index
    %c0_15 = arith.constant 0 : index
    %c0_16 = arith.constant 0 : index
    %14 = vector.load %arg5[%c0_14, %c0_15, %c0_16] : memref<1x1x4xf32, #tpu.memory_space<vmem>>, vector<1x1x4xf32>
    %15 = vector.shape_cast %14 : vector<1x1x4xf32> to vector<1x4xf32>
    %16 = arith.addf %13, %15 : vector<1x4xf32>
    %cst_17 = arith.constant 3.000000e+00 : f32
    %17 = vector.broadcast %cst_17 : f32 to vector<1x4xf32>
    %18 = arith.addf %16, %17 : vector<1x4xf32>
    %cst_18 = arith.constant 0.000000e+00 : f32
    %cst_19 = arith.constant 6.000000e+00 : f32
    %19 = vector.broadcast %cst_18 : f32 to vector<1x4xf32>
    %20 = arith.maximumf %19, %18 : vector<1x4xf32>
    %21 = vector.broadcast %cst_19 : f32 to vector<1x4xf32>
    %22 = arith.minimumf %21, %20 : vector<1x4xf32>
    %cst_20 = arith.constant 0.166666672 : f32
    %23 = vector.broadcast %cst_20 : f32 to vector<1x4xf32>
    %24 = arith.mulf %22, %23 : vector<1x4xf32>
    %c0_21 = arith.constant 0 : index
    %c0_22 = arith.constant 0 : index
    %c0_23 = arith.constant 0 : index
    %25 = vector.load %arg1[%c0_21, %c0_22, %c0_23] : memref<1x4x256xf32, #tpu.memory_space<vmem>>, vector<1x4x256xf32>
    %26 = vector.shape_cast %24 : vector<1x4xf32> to vector<1x4x1xf32>
    %27 = vector.broadcast %26 : vector<1x4x1xf32> to vector<1x4x256xf32>
    %28 = arith.mulf %25, %27 : vector<1x4x256xf32>
    %c0_24 = arith.constant 0 : index
    %c0_25 = arith.constant 0 : index
    %c0_26 = arith.constant 0 : index
    %29 = vector.load %arg6[%c0_24, %c0_25, %c0_26] : memref<1x4x256xf32, #tpu.memory_space<vmem>>, vector<1x4x256xf32>
    tpu.vector_store %arg6[%c0_24, %c0_25, %c0_26], %28 {strides = array<i32>} : memref<1x4x256xf32, #tpu.memory_space<vmem>>, vector<1x4x256xf32>,
    return
  }
  func.func @transform_0(%arg0: i32) -> (i32, i32, i32) {
    %c0_i32 = arith.constant 0 : i32
    %c0_i32_0 = arith.constant 0 : i32
    %c0_i32_1 = arith.constant 0 : i32
    return %arg0, %c0_i32, %c0_i32_0 : i32, i32, i32
  }
  func.func @transform_1(%arg0: i32) -> (i32, i32, i32) {
    %c0_i32 = arith.constant 0 : i32
    %c0_i32_0 = arith.constant 0 : i32
    %c0_i32_1 = arith.constant 0 : i32
    %c0_i32_2 = arith.constant 0 : i32
    return %c0_i32, %c0_i32_0, %c0_i32_1 : i32, i32, i32
  }
  func.func @transform_2(%arg0: i32) -> (i32, i32) {
    %c0_i32 = arith.constant 0 : i32
    %c0_i32_0 = arith.constant 0 : i32
    %c0_i32_1 = arith.constant 0 : i32
    return %c0_i32, %c0_i32_0 : i32, i32
  }
  func.func @transform_3(%arg0: i32) -> (i32, i32, i32) {
    %c0_i32 = arith.constant 0 : i32
    %c0_i32_0 = arith.constant 0 : i32
    %c0_i32_1 = arith.constant 0 : i32
    %c0_i32_2 = arith.constant 0 : i32
    return %c0_i32, %c0_i32_0, %c0_i32_1 : i32, i32, i32
  }
  func.func @transform_4(%arg0: i32) -> (i32, i32, i32) {
    %c0_i32 = arith.constant 0 : i32
    %c0_i32_0 = arith.constant 0 : i32
    %c0_i32_1 = arith.constant 0 : i32
    %c0_i32_2 = arith.constant 0 : i32
    return %c0_i32, %c0_i32_0, %c0_i32_1 : i32, i32, i32
  }
  func.func @transform_5(%arg0: i32) -> (i32, i32, i32) {
    %c0_i32 = arith.constant 0 : i32
    %c0_i32_0 = arith.constant 0 : i32
    %c0_i32_1 = arith.constant 0 : i32
    return %arg0, %c0_i32, %c0_i32_0 : i32, i32, i32
  }
}

</mosaic_0001>

<llo_original>
// kernel: tpu_custom_call.1
$region0: #{tpu_custom_call.1}
  #allocation0 [shape = 'u32[]', space=smem, size = 0x4, offset = 0x4, fixed_abs, tag = 'smem constant byte address 0x4 - core index']
  #allocation1 [shape = 'u32[72,128]{1,0:T(1,128)}', space=vmem, size = 0x9000, scoped, tag = 'internal scratch']
  #allocation2 [shape = 'f32[1,1]{1,0:T(1,128)S(1)}', space=vmem, size = 0x200, scoped, tag = 'scoped memory for tpu_custom_call.1']
  %s0 = inlined_call_operand.hbm [shape: f32[2,4,256], index: 0, kind: input, shape index: {}]
  %s1 = inlined_call_operand.vmem [shape: f32[1,4,1], index: 1, kind: input, shape index: {}]
  %s2 = inlined_call_operand.<no memory space> [shape: f32[1,1], index: 2, kind: input, shape index: {}]
  %s3 = inlined_call_operand.vmem [shape: f32[1,1,4], index: 3, kind: input, shape index: {}]
  %s4 = inlined_call_operand.vmem [shape: f32[1,1,4], index: 4, kind: input, shape index: {}]
  %s5 = inlined_call_operand.hbm [shape: f32[2,4,256], index: 5, kind: output, shape index: {}]
  %s6 = sld [smem:[#allocation0]]
  $region57: #{tpu_custom_call.1} parent=0
    _
  %s8 = ssub.s32 1, %s6
  %s9 = scalar_select 0, %s8, %s6
  %v10 = vstv %s2
  %11 = vst [vmem:[#allocation2] sm:$0x1] %v10
  $region1: #{tpu_custom_call.1} parent=0
    #allocation3 [shape = 'u8[8192]{0}', space=vmem, size = 0x2000, scoped, tag = 'input window, operand 0']
    #allocation4 [shape = 's32[2]{0}', space=sflag, size = 0x8, scoped, tag = 'scoped memory for tpu_custom_call.1']
    #allocation5 [shape = 's32[2]{0}', space=sflag, size = 0x8, scoped, tag = 'scoped memory for tpu_custom_call.1']
    #allocation6 [shape = 'u8[8192]{0}', space=vmem, size = 0x2000, scoped, tag = 'output window, operand 0']
    %12 = vsyncpa [#allocation4], 0
    %s13 = scalar_lea.sflag [#allocation4], 1
    %14 = vsyncpa %s13, 0
    %15 = vsyncpa [#allocation5], 0
    %s16 = scalar_lea.sflag [#allocation5], 1
    %17 = vsyncpa %s16, 0
    loop: start=0, step=1, limit=4
    $region2: #{tpu_custom_call.1} parent=1 // loop_pre_header
      _
    $region3: #{tpu_custom_call.1} parent=1 // loop_header
      %s19 = sphi 0, %s23
      %p20 = scmp.ge.s32.totalorder %s19, 4
      %s29 = sphi 0, %s31
      %s32 = sphi 0, %s29
      %s33 = sphi 0, %s32
      %s49 = sphi 0, %s33
      %s53 = sphi 0, %s53
      %s55 = sphi 0, %s53
      %s56 = sphi 0, %s55
      %s70 = sphi 0, %s56
      %s74 = sphi 0, %s74
      %s76 = sphi 0, %s74
      %s77 = sphi 0, %s76
      %s91 = sphi 0, %s77
      %s95 = sphi 0, %s95
      %s97 = sphi 0, %s95
      %s98 = sphi 0, %s97
      %s112 = sphi 0, %s98
      %s116 = sphi 0, %s116
      %s118 = sphi 0, %s116
      %s119 = sphi 0, %s118
      %s133 = sphi 0, %s119
      %s139 = sphi 0, %s141
      %s142 = sphi 0, %s139
      %s143 = sphi 0, %s142
      %s159 = sphi 0, %s143
    $region4: #{tpu_custom_call.1} parent=1 // loop_header_branch
      %22 = sbr.rel (%p20) target = $region8
    $region5: #{tpu_custom_call.1} parent=1 // loop_body
      %s24 = ssub.s32 %s19, 1
      %s25 = ssub.s32 %s19, 2
      %s26 = sadd.s32 %s19, 1
      %s27 = ssub.s32 %s19, %s26
      %p28 = scmp.eq.s32.totalorder %s27, 0
      %s30 = sadd.s32 %s29, 1
      %s31 = scalar_select %p28, %s29, %s30
      %p34 = pneg %p28
      %p35 = scmp.eq.s32.totalorder %s19, 1
      %p36 = por %p34, %p35
      %p37 = scmp.ne.s32.totalorder %s29, %s32
      %p38 = scmp.eq.s32.totalorder %s19, 0
      %p39 = por %p37, %p38
      %p40 = scmp.ne.s32.totalorder %s29, %s32
      %p41 = scmp.eq.s32.totalorder %s24, 1
      %p42 = por %p40, %p41
      %p43 = scmp.ne.s32.totalorder %s32, %s33
      %p44 = scmp.eq.s32.totalorder %s24, 0
      %p45 = por %p43, %p44
      %p46 = scmp.ne.s32.totalorder %s32, %s33
      %p47 = scmp.eq.s32.totalorder %s25, 1
      %p48 = por %p46, %p47
      %p50 = scmp.ne.s32.totalorder %s33, %s49
      %p51 = scmp.eq.s32.totalorder %s25, 0
      %p52 = por %p50, %p51
      %s54 = sadd.s32 %s53, 1
      %p57 = scmp.eq.s32.totalorder %s19, 1
      %p58 = scmp.ne.s32.totalorder %s53, %s55
      %p59 = scmp.eq.s32.totalorder %s19, 0
      %p60 = por %p58, %p59
      %p61 = scmp.ne.s32.totalorder %s53, %s55
      %p62 = scmp.eq.s32.totalorder %s24, 1
      %p63 = por %p61, %p62
      %p64 = scmp.ne.s32.totalorder %s55, %s56
      %p65 = scmp.eq.s32.totalorder %s24, 0
      %p66 = por %p64, %p65
      %p67 = scmp.ne.s32.totalorder %s55, %s56
      %p68 = scmp.eq.s32.totalorder %s25, 1
      %p69 = por %p67, %p68
      %p71 = scmp.ne.s32.totalorder %s56, %s70
      %p72 = scmp.eq.s32.totalorder %s25, 0
      %p73 = por %p71, %p72
      %s75 = sadd.s32 %s74, 1
      %p78 = scmp.eq.s32.totalorder %s19, 1
      %p79 = scmp.ne.s32.totalorder %s74, %s76
      %p80 = scmp.eq.s32.totalorder %s19, 0
      %p81 = por %p79, %p80
      %p82 = scmp.ne.s32.totalorder %s74, %s76
      %p83 = scmp.eq.s32.totalorder %s24, 1
      %p84 = por %p82, %p83
      %p85 = scmp.ne.s32.totalorder %s76, %s77
      %p86 = scmp.eq.s32.totalorder %s24, 0
      %p87 = por %p85, %p86
      %p88 = scmp.ne.s32.totalorder %s76, %s77
      %p89 = scmp.eq.s32.totalorder %s25, 1
      %p90 = por %p88, %p89
      %p92 = scmp.ne.s32.totalorder %s77, %s91
      %p93 = scmp.eq.s32.totalorder %s25, 0
      %p94 = por %p92, %p93
      %s96 = sadd.s32 %s95, 1
      %p99 = scmp.eq.s32.totalorder %s19, 1
      %p100 = scmp.ne.s32.totalorder %s95, %s97
      %p101 = scmp.eq.s32.totalorder %s19, 0
      %p102 = por %p100, %p101
      %p103 = scmp.ne.s32.totalorder %s95, %s97
      %p104 = scmp.eq.s32.totalorder %s24, 1
      %p105 = por %p103, %p104
      %p106 = scmp.ne.s32.totalorder %s97, %s98
      %p107 = scmp.eq.s32.totalorder %s24, 0
      %p108 = por %p106, %p107
      %p109 = scmp.ne.s32.totalorder %s97, %s98
      %p110 = scmp.eq.s32.totalorder %s25, 1
      %p111 = por %p109, %p110
      %p113 = scmp.ne.s32.totalorder %s98, %s112
      %p114 = scmp.eq.s32.totalorder %s25, 0
      %p115 = por %p113, %p114
      %s117 = sadd.s32 %s116, 1
      %p120 = scmp.eq.s32.totalorder %s19, 1
      %p121 = scmp.ne.s32.totalorder %s116, %s118
      %p122 = scmp.eq.s32.totalorder %s19, 0
      %p123 = por %p121, %p122
      %p124 = scmp.ne.s32.totalorder %s116, %s118
      %p125 = scmp.eq.s32.totalorder %s24, 1
      %p126 = por %p124, %p125
      %p127 = scmp.ne.s32.totalorder %s118, %s119
      %p128 = scmp.eq.s32.totalorder %s24, 0
      %p129 = por %p127, %p128
      %p130 = scmp.ne.s32.totalorder %s118, %s119
      %p131 = scmp.eq.s32.totalorder %s25, 1
      %p132 = por %p130, %p131
      %p134 = scmp.ne.s32.totalorder %s119, %s133
      %p135 = scmp.eq.s32.totalorder %s25, 0
      %p136 = por %p134, %p135
      %s137 = ssub.s32 %s19, %s26
      %p138 = scmp.eq.s32.totalorder %s137, 0
      %s140 = sadd.s32 %s139, 1
      %s141 = scalar_select %p138, %s139, %s140
      %p144 = pneg %p138
      %p145 = scmp.eq.s32.totalorder %s19, 1
      %p146 = por %p144, %p145
      %p147 = scmp.ne.s32.totalorder %s139, %s142
      %p148 = scmp.eq.s32.totalorder %s19, 0
      %p149 = por %p147, %p148
      %p150 = scmp.ne.s32.totalorder %s139, %s142
      %p151 = scmp.eq.s32.totalorder %s24, 1
      %p152 = por %p150, %p151
      %p153 = scmp.ne.s32.totalorder %s142, %s143
      %p154 = scmp.eq.s32.totalorder %s24, 0
      %p155 = por %p153, %p154
      %p156 = scmp.ne.s32.totalorder %s142, %s143
      %p157 = scmp.eq.s32.totalorder %s25, 1
      %p158 = por %p156, %p157
      %p160 = scmp.ne.s32.totalorder %s143, %s159
      %p161 = scmp.eq.s32.totalorder %s25, 0
      %p162 = por %p160, %p161
      %p163 = scmp.le.s32.totalorder 1, %s19
      %p164 = scmp.lt.s32.totalorder %s19, 3
      %p165 = pnand %p163, %p164
      %p166 = pneg %p165
      // Predicated region
      $region9: #{tpu_custom_call.1} parent=5 // pred_check
        _
      $region10: #{tpu_custom_call.1} parent=5 // pred_check_branch
        %168 = sbr.rel (%p165) target = $region12
      $region11: #{tpu_custom_call.1} parent=5 // pred_region
        %s169 = ssub.s32 %s19, 1
        // Predicated region
        $region13: #{tpu_custom_call.1} parent=11 // pred_check
          %p170 = pneg %p66
        $region14: #{tpu_custom_call.1} parent=11 // pred_check_branch
          %172 = sbr.rel (%p170) target = $region16
        $region15: #{tpu_custom_call.1} parent=11 // pred_region
          _
        $region16: #{tpu_custom_call.1} parent=11 // pred_fallthru
          _
        // Predicated region
        $region17: #{tpu_custom_call.1} parent=11 // pred_check
          %p173 = pneg %p87
        $region18: #{tpu_custom_call.1} parent=11 // pred_check_branch
          %175 = sbr.rel (%p173) target = $region20
        $region19: #{tpu_custom_call.1} parent=11 // pred_region
          _
        $region20: #{tpu_custom_call.1} parent=11 // pred_fallthru
          _
        // Predicated region
        $region21: #{tpu_custom_call.1} parent=11 // pred_check
          %p176 = pneg %p108
        $region22: #{tpu_custom_call.1} parent=11 // pred_check_branch
          %178 = sbr.rel (%p176) target = $region24
        $region23: #{tpu_custom_call.1} parent=11 // pred_region
          _
        $region24: #{tpu_custom_call.1} parent=11 // pred_fallthru
          _
        // Predicated region
        $region25: #{tpu_custom_call.1} parent=11 // pred_check
          %p179 = pneg %p129
        $region26: #{tpu_custom_call.1} parent=11 // pred_check_branch
          %181 = sbr.rel (%p179) target = $region28
        $region27: #{tpu_custom_call.1} parent=11 // pred_region
          _
        $region28: #{tpu_custom_call.1} parent=11 // pred_fallthru
          _
      $region12: #{tpu_custom_call.1} parent=5 // pred_fallthru
        _
      %p182 = scmp.lt.s32.totalorder %s19, 2
      // Predicated region
      $region29: #{tpu_custom_call.1} parent=5 // pred_check
        %p183 = pneg %p182
      $region30: #{tpu_custom_call.1} parent=5 // pred_check_branch
        %185 = sbr.rel (%p183) target = $region32
      $region31: #{tpu_custom_call.1} parent=5 // pred_region
        // Predicated region
        $region33: #{tpu_custom_call.1} parent=31 // pred_check
          %p186 = pneg %p39
        $region34: #{tpu_custom_call.1} parent=31 // pred_check_branch
          %188 = sbr.rel (%p186) target = $region36
        $region35: #{tpu_custom_call.1} parent=31 // pred_region
          %s189 = sand.u32 %s29, 1
          %s190 = scalar_lea.sflag [#allocation4], %s189
          %s191 = sand.u32 %s29, 1
          %s192 = smul.addr %s191, 8
          %s193 = scalar_lea.vmem [#allocation3], %s192
          %195 = vsyncadd %s190, 0
          %s196 = smul.addr %s19, 2
          %s197 = smul.addr %s196, 4
          %s198 = scalar_lea.hbm %s0, %s197
          %s200 = sshll.u32 %s198, 4
          %s201 = int_to_ptr.hbm [resolvable:$true] %s200
          %s202 = sshll.u32 %s193, 4
          %s203 = int_to_ptr.vmem [resolvable:$true] %s202
          %205 = dma.hbm_to_vmem [thread:$0]  %s201, 128, %s203, %s190
        $region36: #{tpu_custom_call.1} parent=31 // pred_fallthru
          _
      $region32: #{tpu_custom_call.1} parent=5 // pred_fallthru
        _
      %p206 = scmp.le.s32.totalorder 1, %s19
      %p207 = scmp.lt.s32.totalorder %s19, 3
      %p208 = pnand %p206, %p207
      %p209 = pneg %p208
      // Predicated region
      $region37: #{tpu_custom_call.1} parent=5 // pred_check
        _
      $region38: #{tpu_custom_call.1} parent=5 // pred_check_branch
        %211 = sbr.rel (%p208) target = $region40
      $region39: #{tpu_custom_call.1} parent=5 // pred_region
        %s212 = ssub.s32 %s19, 1
        %s213 = sand.u32 %s32, 1
        %s214 = scalar_lea.sflag [#allocation4], %s213
        %s215 = sand.u32 %s32, 1
        %s216 = smul.addr %s215, 8
        %s217 = scalar_lea.vmem [#allocation3], %s216
        // Predicated region
        $region41: #{tpu_custom_call.1} parent=39 // pred_check
          %p218 = pneg %p45
        $region42: #{tpu_custom_call.1} parent=39 // pred_check_branch
          %220 = sbr.rel (%p218) target = $region44
        $region43: #{tpu_custom_call.1} parent=39 // pred_region
          %222 = dma.done %s214, 128
        $region44: #{tpu_custom_call.1} parent=39 // pred_fallthru
          _
        %s223 = sand.u32 %s32, 1
        %s224 = scalar_lea.sflag [#allocation4], %s223
        %s225 = sand.u32 %s32, 1
        %s226 = smul.addr %s225, 8
        %s227 = scalar_lea.vmem [#allocation3], %s226
        %p228 = pneg %p45
        %p229 = pneg %p42
        %p230 = pneg %p66
        %p231 = pneg %p63
        %p232 = pneg %p87
        %p233 = pneg %p84
        %p234 = pneg %p108
        %p235 = pneg %p105
        %p236 = pneg %p129
        %p237 = pneg %p126
        %p238 = pneg %p155
        %p239 = pneg %p152
        %s240 = sand.u32 %s142, 1
        %s241 = scalar_lea.sflag [#allocation5], %s240
        %s242 = sand.u32 %s142, 1
        %s243 = smul.addr %s242, 8
        %s244 = scalar_lea.vmem [#allocation6], %s243
        %v245 = vld [vmem:[#allocation2] sm:$0x1]
        %v246 = vld [vmem:[%s217] sm:$0xff]
        %248 = vst [vmem:[#allocation1] ss:$2 sm:$0xff] %v246
        %v249 = vld.sshfl [vmem:[#allocation1] sm:$0xff pattern:$0x75316420]
        %v250 = vld.sshfl [vmem:[#allocation1 + $0x8] sm:$0xff pattern:$0x75316420]
        %vm253 = vcmask 1043456
        %v254 = vsel %vm253, %v249, 0.0
        %v255 = vsel %vm253, %v250, 0.0
        %v256 = vadd.f32 %v254, %v255
        %257 = vadd.xlane.f32.xlu0 %v256
        %v258 = vpop.xlane.xlu0 %257
        %v259 = vmul.f32 %v258, 0.00390625
        %v260 = vld [vmem:[%s1] sm:$0xf]
        %v262 = vlaneseq
        %v263 = vand.u32 %v262, 127
        %v264 = vperm.slane %v259, %v263
        %vm265 = vcmask 31744
        %v266 = vsel %vm265, %v264, 0
        %v269 = vsel %vm253, %v260, 0
        %271 = vmatpush.msra.mxu0 0.0
        %272 = vmatpush.msra.mxu0 0.0
        %273 = vmatpush.msra.mxu0 0.0
        %274 = vmatpush.msra.mxu0 0.0
        %275 = vmatpush.msra.mxu0 0.0
        %276 = vmatpush.msra.mxu0 0.0
        %277 = vmatpush.msra.mxu0 0.0
        %278 = vmatpush.msra.mxu0 0.0
        %279 = vmatpush.msra.mxu0 0.0
        %280 = vmatpush.msra.mxu0 0.0
        %281 = vmatpush.msra.mxu0 0.0
        %282 = vmatpush.msra.mxu0 0.0
        %283 = vmatpush.msra.mxu0 0.0
        %284 = vmatpush.msra.mxu0 0.0
        %285 = vmatpush.msra.mxu0 0.0
        %286 = vmatpush.msra.mxu0 %v269
        %287 = vmatmul.f32.gmra.mxu0 %v266
        %v288 = vpop.f32.mrf.mxu0
        %v289 = vadd.f32 0.0, %v288
        %290 = vdwg.mxu0
        %v291 = vadd.f32 %v245, %v289
        %v292 = vmax.f32 %v291, 0.0
        %v293 = vld [vmem:[%s3] sm:$0x1]
        %v294 = vld [vmem:[%s4] sm:$0x1]
        %vm295 = vcmask 7168
        %v297 = vsel %vm295, %v292, 0
        %vm299 = vcmask 1040384
        %v301 = vsel %vm299, %v293, 0
        %303 = vmatpush.msra.mxu0 0.0
        %304 = vmatpush.msra.mxu0 0.0
        %305 = vmatpush.msra.mxu0 0.0
        %306 = vmatpush.msra.mxu0 0.0
        %307 = vmatpush.msra.mxu0 0.0
        %308 = vmatpush.msra.mxu0 0.0
        %309 = vmatpush.msra.mxu0 0.0
        %310 = vmatpush.msra.mxu0 0.0
        %311 = vmatpush.msra.mxu0 0.0
        %312 = vmatpush.msra.mxu0 0.0
        %313 = vmatpush.msra.mxu0 0.0
        %314 = vmatpush.msra.mxu0 0.0
        %315 = vmatpush.msra.mxu0 0.0
        %316 = vmatpush.msra.mxu0 0.0
        %317 = vmatpush.msra.mxu0 0.0
        %318 = vmatpush.msra.mxu0 %v301
        %319 = vmatmul.f32.gmra.mxu0 %v297
        %v320 = vpop.f32.mrf.mxu0
        %v321 = vadd.f32 %v294, %v320
        %322 = vdwg.mxu0
        %v323 = vadd.f32 %v321, 3.0
        %v324 = vmax.f32 %v323, 0.0
        %v325 = vmin.f32 %v324, 6.0
        %v326 = vmul.f32 %v325, 0.16666667
        %v327 = vperm.slane %v326, 0
        %v328 = vlaneseq
        %v329 = vshrl.u32 %v328, 7
        %331 = vset.pattern.permute.xlu0 %v329
        %332 = vperm.xlu0 %331, %v327
        %v333 = vpop.permute.xlu0 %332
        %v336 = vunpack.c.l.s4 839922192
        %v337 = vunpack.c.0.s8 %v336
        %v338 = vperm.slane %v333, %v337
        %v340 = vmul.f32 %v246, %v338
        %341 = vst [vmem:[%s244] sm:$0xff] %v340
        %s342 = sand.u32 %s142, 1
        %s343 = scalar_lea.sflag [#allocation5], %s342
        %s344 = sand.u32 %s142, 1
        %s345 = smul.addr %s344, 8
        %s346 = scalar_lea.vmem [#allocation6], %s345
        // Predicated region
        $region45: #{tpu_custom_call.1} parent=39 // pred_check
          %p347 = pneg %p152
        $region46: #{tpu_custom_call.1} parent=39 // pred_check_branch
          %349 = sbr.rel (%p347) target = $region48
        $region47: #{tpu_custom_call.1} parent=39 // pred_region
          %351 = vsyncadd %s343, 0
          %s352 = smul.addr %s24, 2
          %s353 = smul.addr %s352, 4
          %s354 = scalar_lea.hbm %s5, %s353
          %s356 = sshll.u32 %s346, 4
          %s357 = int_to_ptr.vmem [resolvable:$true] %s356
          %s358 = sshll.u32 %s354, 4
          %s359 = int_to_ptr.hbm [resolvable:$true] %s358
          %361 = dma.vmem_to_hbm [thread:$0]  %s357, 128, %s359, %s343
        $region48: #{tpu_custom_call.1} parent=39 // pred_fallthru
          _
      $region40: #{tpu_custom_call.1} parent=5 // pred_fallthru
        _
      %p362 = scmp.le.s32.totalorder 2, %s19
      // Predicated region
      $region49: #{tpu_custom_call.1} parent=5 // pred_check
        %p363 = pneg %p362
      $region50: #{tpu_custom_call.1} parent=5 // pred_check_branch
        %365 = sbr.rel (%p363) target = $region52
      $region51: #{tpu_custom_call.1} parent=5 // pred_region
        %s366 = ssub.s32 %s19, 2
        // Predicated region
        $region53: #{tpu_custom_call.1} parent=51 // pred_check
          %p367 = pneg %p158
        $region54: #{tpu_custom_call.1} parent=51 // pred_check_branch
          %369 = sbr.rel (%p367) target = $region56
        $region55: #{tpu_custom_call.1} parent=51 // pred_region
          %s370 = sand.u32 %s143, 1
          %s371 = scalar_lea.sflag [#allocation5], %s370
          %s372 = sand.u32 %s143, 1
          %s373 = smul.addr %s372, 8
          %s374 = scalar_lea.vmem [#allocation6], %s373
          %376 = dma.done %s371, 128
        $region56: #{tpu_custom_call.1} parent=51 // pred_fallthru
          _
      $region52: #{tpu_custom_call.1} parent=5 // pred_fallthru
        _
    $region6: #{tpu_custom_call.1} parent=1 // loop_footer
      %s23 = sadd.s32 1, %s19
    $region7: #{tpu_custom_call.1} parent=1 // loop_footer_branch
      %18 = sbr.rel target = $region3
    $region8: #{tpu_custom_call.1} parent=1 // loop_exit
      _
    %377 = vsyncpa [#allocation4], 1
    %s378 = scalar_lea.sflag [#allocation4], 1
    %379 = vsyncpa %s378, 1
    %380 = vsyncpa [#allocation5], 1
    %s381 = scalar_lea.sflag [#allocation5], 1
    %382 = vsyncpa %s381, 1

</llo_original>
